<compile_context>
chip_gen: v6e
topology: v6e:2x2x1
jax: 0.10.0
libtpu: 0.0.40
codegen_flags: <defaults>
</compile_context>

<pallas_src>
import jax
import jax.numpy as jnp
from jax.experimental import pallas as pl
from jax.experimental.pallas import tpu as pltpu

HIDDEN = 64
LANE = 128


# --------------------------------------------------------------------------- #
# Kernel
# --------------------------------------------------------------------------- #
def autoencoder_kernel(x_ref,
                       w1_ref, b1_ref,   # encoder layer 1: (D, 64),  (1, 64)
                       w2_ref, b2_ref,   # encoder layer 2: (64, Lp), (1, Lp)
                       w3_ref, b3_ref,   # decoder layer 1: (Lp, 64), (1, 64)
                       w4_ref, b4_ref,   # decoder layer 2: (64, Dp), (1, Dp)
                       z_ref, xr_ref):
    x = x_ref[...]                                   # (tile_b, D), io dtype

    # --- encoder --- (MXU matmuls accumulate in f32; bias/ReLU in f32 on VPU)
    h1 = jnp.dot(x, w1_ref[...], preferred_element_type=jnp.float32) + b1_ref[...]
    h1 = jnp.maximum(h1, 0.0)
    z = jnp.dot(h1.astype(w2_ref.dtype), w2_ref[...],
                preferred_element_type=jnp.float32) + b2_ref[...]

    # --- decoder ---
    h2 = jnp.dot(z.astype(w3_ref.dtype), w3_ref[...],
                 preferred_element_type=jnp.float32) + b3_ref[...]
    h2 = jnp.maximum(h2, 0.0)
    xr = jnp.dot(h2.astype(w4_ref.dtype), w4_ref[...],
                 preferred_element_type=jnp.float32) + b4_ref[...]

    z_ref[...] = z.astype(z_ref.dtype)               # lane-dense (Lp % 128 == 0)
    xr_ref[...] = xr.astype(xr_ref.dtype)            # lane-dense (Dp % 128 == 0)


# --------------------------------------------------------------------------- #
# Helpers
# --------------------------------------------------------------------------- #
def _round_up(n, m):
    return ((n + m - 1) // m) * m


def _vmem_limit_bytes():
    """Generation-aware scoped-VMEM limit: 3/4 of physical, capped at 64 MiB.
    v5e/v6e (128 MiB) -> 64 MiB; v7x (64 MiB/TC) -> 48 MiB."""
    try:
        cap = pltpu.get_tpu_info().vmem_capacity_bytes
    except Exception:
        cap = 128 * 1024 * 1024
    return int(min(3 * cap // 4, 64 * 1024 * 1024))


def _choose_tile_b(D, Lp, Dp, io_bytes, weight_bytes, vmem_limit):
    """Largest batch tile (power-of-two rows, <= 2048) whose working set fits
    the VMEM budget after subtracting the double-buffered weight footprint."""
    # Streamed tiles are double-buffered: x(D) in, z(Lp)+xr(Dp) out, io dtype.
    # Intermediates (h1, h2, f32 z/xr before the store cast) counted once, f32.
    per_row = 2 * (D + Lp + Dp) * io_bytes + (2 * HIDDEN + Lp + Dp) * 4
    budget = vmem_limit - 2 * weight_bytes - (4 << 20)   # weights x2 buffers + margin
    budget = max(budget, 1 << 20)
    tile_b = 2048
    while tile_b > 8 and tile_b * per_row > budget:
        tile_b //= 2
    return max(tile_b, 8)


def _prepare_params(params, Lp, Dp, w_dtype):
    """Zero-pad latent / output columns to lane multiples and cast weights."""
    def pad_cols(a, cols):
        return a if a.shape[1] == cols else jnp.pad(a, ((0, 0), (0, cols - a.shape[1])))

    def pad_rows(a, rows):
        return a if a.shape[0] == rows else jnp.pad(a, ((0, rows - a.shape[0]), (0, 0)))

    w1 = params["w1"].astype(w_dtype)
    b1 = params["b1"].astype(jnp.float32)
    w2 = pad_cols(params["w2"], Lp).astype(w_dtype)
    b2 = pad_cols(params["b2"], Lp).astype(jnp.float32)
    w3 = pad_rows(params["w3"], Lp).astype(w_dtype)
    b3 = params["b3"].astype(jnp.float32)
    w4 = pad_cols(params["w4"], Dp).astype(w_dtype)
    b4 = pad_cols(params["b4"], Dp).astype(jnp.float32)
    return (w1, b1, w2, b2, w3, b3, w4, b4)


# --------------------------------------------------------------------------- #
# Wrapper
# --------------------------------------------------------------------------- #
def autoencoder_forward(x, params, *, tile_b=None, io_dtype=None):
    """x: [B, D]. params: dict of (in,out) weights and (1,out) biases.
    io_dtype: dtype of the streamed x / z / x_recon HBM traffic
    (default: x.dtype == exact f32 semantics; jnp.bfloat16 halves HBM traffic).
    Returns (z [B, L], x_recon [B, D]) in io_dtype."""
    B, D = x.shape
    L = params["w2"].shape[1]
    io_dtype = jnp.dtype(io_dtype) if io_dtype is not None else x.dtype
    io_bytes = io_dtype.itemsize

    # Lane-dense output widths (unmasked vst on every store vreg).
    Lp = _round_up(L, LANE)
    Dp = _round_up(D, LANE)

    prepped = _prepare_params(params, Lp, Dp, io_dtype)
    weight_bytes = sum(int(a.size) * a.dtype.itemsize for a in prepped)

    vmem_limit = _vmem_limit_bytes()
    if tile_b is None:
        tile_b = _choose_tile_b(D, Lp, Dp, io_bytes, weight_bytes, vmem_limit)

    if _round_up(B, 8) <= tile_b:
        # Whole batch fits one tile: single grid step, zero per-step overhead.
        # (block dim == full array dim satisfies the (8,128) rule even if B % 8 != 0)
        tile_b = B
        grid = (1,)
    else:
        # cdiv grid: Mosaic masks the partial boundary block, so we never pad x
        # in HBM nor slice the outputs afterwards (saves ~1 extra read+write of
        # the dominant [B, D] streams).
        grid = (pl.cdiv(B, tile_b),)

    x_in = x if x.dtype == io_dtype else x.astype(io_dtype)

    def const_spec(a):
        # Full-array block, same block index every step -> stays VMEM-resident.
        return pl.BlockSpec(a.shape, lambda i: (0, 0))

    # NOTE(perf): if the x-input DMA is still exposed for tiny D, bump its
    # pipeline depth with pipeline_mode=pl.Buffered(3) -- only after the
    # bigger levers (tile size / bf16 / lane-dense stores) are in place.
    in_specs = [pl.BlockSpec((tile_b, D), lambda i: (i, 0))]   # streamed x tile
    in_specs += [const_spec(a) for a in prepped]               # resident weights

    out_specs = (
        pl.BlockSpec((tile_b, Lp), lambda i: (i, 0)),          # z tile
        pl.BlockSpec((tile_b, Dp), lambda i: (i, 0)),          # x_recon tile
    )

    z_p, xr_p = pl.pallas_call(
        autoencoder_kernel,
        out_shape=(jax.ShapeDtypeStruct((B, Lp), io_dtype),
                   jax.ShapeDtypeStruct((B, Dp), io_dtype)),
        grid=grid,
        in_specs=in_specs,
        out_specs=out_specs,
        compiler_params=pltpu.CompilerParams(
            dimension_semantics=("parallel",),     # megacore sharding on v7x
            vmem_limit_bytes=vmem_limit,
        ),
    )(x_in, *prepped)

    # Drop the zero-padded lanes (tiny [B, Lp]/[B, Dp] slices; the padded
    # columns are exact zeros by construction).
    z = z_p if Lp == L else z_p[:, :L]
    xr = xr_p if Dp == D else xr_p[:, :D]
    return z, xr


# --------------------------------------------------------------------------- #
# Params / reference
# --------------------------------------------------------------------------- #
def init_params(key, input_dim, latent_dim=10, hidden=HIDDEN):
    """PyTorch nn.Linear default init: U(-1/sqrt(fan_in), +1/sqrt(fan_in)).
    Weights stored as (in_features, out_features)."""
    ks = jax.random.split(key, 8)

    def linear(kw, kb, fan_in, fan_out):
        bound = 1.0 / jnp.sqrt(fan_in)
        w = jax.random.uniform(kw, (fan_in, fan_out), jnp.float32, -bound, bound)
        b = jax.random.uniform(kb, (1, fan_out), jnp.float32, -bound, bound)
        return w, b

    w1, b1 = linear(ks[0], ks[1], input_dim, hidden)
    w2, b2 = linear(ks[2], ks[3], hidden, latent_dim)
    w3, b3 = linear(ks[4], ks[5], latent_dim, hidden)
    w4, b4 = linear(ks[6], ks[7], hidden, input_dim)
    return {"w1": w1, "b1": b1, "w2": w2, "b2": b2,
            "w3": w3, "b3": b3, "w4": w4, "b4": b4}


def reference_forward(x, p):
    h1 = jnp.maximum(x @ p["w1"] + p["b1"], 0.0)
    z = h1 @ p["w2"] + p["b2"]
    h2 = jnp.maximum(z @ p["w3"] + p["b3"], 0.0)
    xr = h2 @ p["w4"] + p["b4"]
    return z, xr


# --------------------------------------------------------------------------- #
# Demo / self-test
# --------------------------------------------------------------------------- #
if __name__ == "__main__":
    key = jax.random.PRNGKey(0)
    k_x, k_p = jax.random.split(key)

    B, D, L = 8, 32, 10
    x = jax.random.normal(k_x, (B, D), dtype=jnp.float32)
    params = init_params(k_p, input_dim=D, latent_dim=L, hidden=HIDDEN)

    # f32 path (exact semantics of the PyTorch module), single-step fast path.
    z, x_recon = autoencoder_forward(x, params)
    jax.block_until_ready((z, x_recon))
    z_ref, xr_ref = reference_forward(x, params)
    assert z.shape == (B, L) and x_recon.shape == (B, D)
    assert jnp.allclose(z, z_ref, atol=1e-5, rtol=1e-5)
    assert jnp.allclose(x_recon, xr_ref, atol=1e-5, rtol=1e-5)

    # Batch not a multiple of 8 (whole batch still fits one tile -> no padding).
    B2 = 20
    x2 = jax.random.normal(jax.random.PRNGKey(1), (B2, D), dtype=jnp.float32)
    z2, xr2 = autoencoder_forward(x2, params)
    jax.block_until_ready((z2, xr2))
    z2_ref, xr2_ref = reference_forward(x2, params)
    assert jnp.allclose(z2, z2_ref, atol=1e-5, rtol=1e-5)
    assert jnp.allclose(xr2, xr2_ref, atol=1e-5, rtol=1e-5)

    # Forced small tile: exercises the cdiv grid with a masked boundary block
    # (no jnp.pad of x, no output slicing on the batch axis).
    z3, xr3 = autoencoder_forward(x2, params, tile_b=8)
    jax.block_until_ready((z3, xr3))
    assert jnp.allclose(z3, z2_ref, atol=1e-5, rtol=1e-5)
    assert jnp.allclose(xr3, xr2_ref, atol=1e-5, rtol=1e-5)

    # bf16 I/O path: halves HBM traffic, f32 MXU accumulation (looser tolerance).
    z4, xr4 = autoencoder_forward(x, params, io_dtype=jnp.bfloat16)
    jax.block_until_ready((z4, xr4))
    assert jnp.allclose(z4.astype(jnp.float32), z_ref, atol=1e-1, rtol=1e-1)
    assert jnp.allclose(xr4.astype(jnp.float32), xr_ref, atol=1e-1, rtol=1e-1)

    print("KERNEL_OK")
</pallas_src>

<mosaic_0001>
module attributes {stable_mosaic.version = 11 : i64} {
  func.func @autoencoder_kernel(%arg0: i32, %arg1: memref<8x32xf32, #tpu.memory_space<vmem>>, %arg2: memref<32x64xf32, #tpu.memory_space<vmem>>, %arg3: memref<1x64xf32, #tpu.memory_space<vmem>>, %arg4: memref<64x128xf32, #tpu.memory_space<vmem>>, %arg5: memref<1x128xf32, #tpu.memory_space<vmem>>, %arg6: memref<128x64xf32, #tpu.memory_space<vmem>>, %arg7: memref<1x64xf32, #tpu.memory_space<vmem>>, %arg8: memref<64x128xf32, #tpu.memory_space<vmem>>, %arg9: memref<1x128xf32, #tpu.memory_space<vmem>>, %arg10: memref<8x128xf32, #tpu.memory_space<vmem>>, %arg11: memref<8x128xf32, #tpu.memory_space<vmem>>) attributes {dimension_semantics = [#tpu.dimension_semantics<parallel>], iteration_bounds = array<i64: 1>, scalar_prefetch = 0 : i64, scratch_operands = 0 : i64, tpu.core_type = #tpu.core_type<tc>, window_params = [{transform_indices = @transform_0, window_bounds = array<i64: 8, 32>}, {pipeline_mode = #tpu.pipeline_mode<synchronous>, transform_indices = @transform_1, window_bounds = array<i64: 32, 64>}, {pipeline_mode = #tpu.pipeline_mode<synchronous>, transform_indices = @transform_2, window_bounds = array<i64: 1, 64>}, {pipeline_mode = #tpu.pipeline_mode<synchronous>, transform_indices = @transform_3, window_bounds = array<i64: 64, 128>}, {pipeline_mode = #tpu.pipeline_mode<synchronous>, transform_indices = @transform_4, window_bounds = array<i64: 1, 128>}, {pipeline_mode = #tpu.pipeline_mode<synchronous>, transform_indices = @transform_5, window_bounds = array<i64: 128, 64>}, {pipeline_mode = #tpu.pipeline_mode<synchronous>, transform_indices = @transform_6, window_bounds = array<i64: 1, 64>}, {pipeline_mode = #tpu.pipeline_mode<synchronous>, transform_indices = @transform_7, window_bounds = array<i64: 64, 128>}, {pipeline_mode = #tpu.pipeline_mode<synchronous>, transform_indices = @transform_8, window_bounds = array<i64: 1, 128>}, {transform_indices = @transform_9, window_bounds = array<i64: 8, 128>}, {transform_indices = @transform_10, window_bounds = array<i64: 8, 128>}]} {
    %c0 = arith.constant 0 : index
    %c0_0 = arith.constant 0 : index
    %0 = vector.load %arg1[%c0, %c0_0] : memref<8x32xf32, #tpu.memory_space<vmem>>, vector<8x32xf32>
    %c0_1 = arith.constant 0 : index
    %c0_2 = arith.constant 0 : index
    %1 = vector.load %arg2[%c0_1, %c0_2] : memref<32x64xf32, #tpu.memory_space<vmem>>, vector<32x64xf32>
    %cst = arith.constant dense<0.000000e+00> : vector<8x64xf32>
    %2 = tpu.matmul %0, %1, %cst {dimension_numbers = #tpu.dot_dimension_numbers<[1], [0], [0], [1], [0, 0, 1, 1], [], []>} : vector<8x32xf32>, vector<32x64xf32>, vector<8x64xf32> -> vector<8x64xf32>
    %c0_3 = arith.constant 0 : index
    %c0_4 = arith.constant 0 : index
    %3 = vector.load %arg3[%c0_3, %c0_4] : memref<1x64xf32, #tpu.memory_space<vmem>>, vector<1x64xf32>
    %4 = vector.broadcast %3 : vector<1x64xf32> to vector<8x64xf32>
    %5 = arith.addf %2, %4 : vector<8x64xf32>
    %cst_5 = arith.constant 0.000000e+00 : f32
    %6 = vector.broadcast %cst_5 : f32 to vector<8x64xf32>
    %7 = arith.maximumf %5, %6 : vector<8x64xf32>
    %c0_6 = arith.constant 0 : index
    %c0_7 = arith.constant 0 : index
    %8 = vector.load %arg4[%c0_6, %c0_7] : memref<64x128xf32, #tpu.memory_space<vmem>>, vector<64x128xf32>
    %cst_8 = arith.constant dense<0.000000e+00> : vector<8x128xf32>
    %9 = tpu.matmul %7, %8, %cst_8 {dimension_numbers = #tpu.dot_dimension_numbers<[1], [0], [0], [1], [0, 0, 1, 1], [], []>} : vector<8x64xf32>, vector<64x128xf32>, vector<8x128xf32> -> vector<8x128xf32>
    %c0_9 = arith.constant 0 : index
    %c0_10 = arith.constant 0 : index
    %10 = vector.load %arg5[%c0_9, %c0_10] : memref<1x128xf32, #tpu.memory_space<vmem>>, vector<1x128xf32>
    %11 = vector.broadcast %10 : vector<1x128xf32> to vector<8x128xf32>
    %12 = arith.addf %9, %11 : vector<8x128xf32>
    %c0_11 = arith.constant 0 : index
    %c0_12 = arith.constant 0 : index
    %13 = vector.load %arg6[%c0_11, %c0_12] : memref<128x64xf32, #tpu.memory_space<vmem>>, vector<128x64xf32>
    %cst_13 = arith.constant dense<0.000000e+00> : vector<8x64xf32>
    %14 = tpu.matmul %12, %13, %cst_13 {dimension_numbers = #tpu.dot_dimension_numbers<[1], [0], [0], [1], [0, 0, 1, 1], [], []>} : vector<8x128xf32>, vector<128x64xf32>, vector<8x64xf32> -> vector<8x64xf32>
    %c0_14 = arith.constant 0 : index
    %c0_15 = arith.constant 0 : index
    %15 = vector.load %arg7[%c0_14, %c0_15] : memref<1x64xf32, #tpu.memory_space<vmem>>, vector<1x64xf32>
    %16 = vector.broadcast %15 : vector<1x64xf32> to vector<8x64xf32>
    %17 = arith.addf %14, %16 : vector<8x64xf32>
    %cst_16 = arith.constant 0.000000e+00 : f32
    %18 = vector.broadcast %cst_16 : f32 to vector<8x64xf32>
    %19 = arith.maximumf %17, %18 : vector<8x64xf32>
    %c0_17 = arith.constant 0 : index
    %c0_18 = arith.constant 0 : index
    %20 = vector.load %arg8[%c0_17, %c0_18] : memref<64x128xf32, #tpu.memory_space<vmem>>, vector<64x128xf32>
    %cst_19 = arith.constant dense<0.000000e+00> : vector<8x128xf32>
    %21 = tpu.matmul %19, %20, %cst_19 {dimension_numbers = #tpu.dot_dimension_numbers<[1], [0], [0], [1], [0, 0, 1, 1], [], []>} : vector<8x64xf32>, vector<64x128xf32>, vector<8x128xf32> -> vector<8x128xf32>
    %c0_20 = arith.constant 0 : index
    %c0_21 = arith.constant 0 : index
    %22 = vector.load %arg9[%c0_20, %c0_21] : memref<1x128xf32, #tpu.memory_space<vmem>>, vector<1x128xf32>
    %23 = vector.broadcast %22 : vector<1x128xf32> to vector<8x128xf32>
    %24 = arith.addf %21, %23 : vector<8x128xf32>
    %c0_22 = arith.constant 0 : index
    %c0_23 = arith.constant 0 : index
    %25 = vector.load %arg10[%c0_22, %c0_23] : memref<8x128xf32, #tpu.memory_space<vmem>>, vector<8x128xf32>
    tpu.vector_store %arg10[%c0_22, %c0_23], %12 {strides = array<i32>} : memref<8x128xf32, #tpu.memory_space<vmem>>, vector<8x128xf32>,
    %c0_24 = arith.constant 0 : index
    %c0_25 = arith.constant 0 : index
    %26 = vector.load %arg11[%c0_24, %c0_25] : memref<8x128xf32, #tpu.memory_space<vmem>>, vector<8x128xf32>
    tpu.vector_store %arg11[%c0_24, %c0_25], %24 {strides = array<i32>} : memref<8x128xf32, #tpu.memory_space<vmem>>, vector<8x128xf32>,
    return
  }
  func.func @transform_0(%arg0: i32) -> (i32, i32) {
    %c0_i32 = arith.constant 0 : i32
    %c0_i32_0 = arith.constant 0 : i32
    return %arg0, %c0_i32 : i32, i32
  }
  func.func @transform_1(%arg0: i32) -> (i32, i32) {
    %c0_i32 = arith.constant 0 : i32
    %c0_i32_0 = arith.constant 0 : i32
    %c0_i32_1 = arith.constant 0 : i32
    return %c0_i32, %c0_i32_0 : i32, i32
  }
  func.func @transform_2(%arg0: i32) -> (i32, i32) {
    %c0_i32 = arith.constant 0 : i32
    %c0_i32_0 = arith.constant 0 : i32
    %c0_i32_1 = arith.constant 0 : i32
    return %c0_i32, %c0_i32_0 : i32, i32
  }
  func.func @transform_3(%arg0: i32) -> (i32, i32) {
    %c0_i32 = arith.constant 0 : i32
    %c0_i32_0 = arith.constant 0 : i32
    %c0_i32_1 = arith.constant 0 : i32
    return %c0_i32, %c0_i32_0 : i32, i32
  }
  func.func @transform_4(%arg0: i32) -> (i32, i32) {
    %c0_i32 = arith.constant 0 : i32
    %c0_i32_0 = arith.constant 0 : i32
    %c0_i32_1 = arith.constant 0 : i32
    return %c0_i32, %c0_i32_0 : i32, i32
  }
  func.func @transform_5(%arg0: i32) -> (i32, i32) {
    %c0_i32 = arith.constant 0 : i32
    %c0_i32_0 = arith.constant 0 : i32
    %c0_i32_1 = arith.constant 0 : i32
    return %c0_i32, %c0_i32_0 : i32, i32
  }
  func.func @transform_6(%arg0: i32) -> (i32, i32) {
    %c0_i32 = arith.constant 0 : i32
    %c0_i32_0 = arith.constant 0 : i32
    %c0_i32_1 = arith.constant 0 : i32
    return %c0_i32, %c0_i32_0 : i32, i32
  }
  func.func @transform_7(%arg0: i32) -> (i32, i32) {
    %c0_i32 = arith.constant 0 : i32
    %c0_i32_0 = arith.constant 0 : i32
    %c0_i32_1 = arith.constant 0 : i32
    return %c0_i32, %c0_i32_0 : i32, i32
  }
  func.func @transform_8(%arg0: i32) -> (i32, i32) {
    %c0_i32 = arith.constant 0 : i32
    %c0_i32_0 = arith.constant 0 : i32
    %c0_i32_1 = arith.constant 0 : i32
    return %c0_i32, %c0_i32_0 : i32, i32
  }
  func.func @transform_9(%arg0: i32) -> (i32, i32) {
    %c0_i32 = arith.constant 0 : i32
    %c0_i32_0 = arith.constant 0 : i32
    return %arg0, %c0_i32 : i32, i32
  }
  func.func @transform_10(%arg0: i32) -> (i32, i32) {
    %c0_i32 = arith.constant 0 : i32
    %c0_i32_0 = arith.constant 0 : i32
    return %arg0, %c0_i32 : i32, i32
  }
}

</mosaic_0001>

<llo_original>
// kernel: tpu_custom_call.1
$region0: #{tpu_custom_call.1}
  #allocation0 [shape = 'u32[]', space=smem, size = 0x4, offset = 0x4, fixed_abs, tag = 'smem constant byte address 0x4 - core index']
  #allocation1 [shape = 'u32[144,128]{1,0:T(1,128)}', space=vmem, size = 0x12000, scoped, tag = 'internal scratch']
  %s0 = inlined_call_operand.vmem [shape: f32[8,32], index: 0, kind: input, shape index: {}]
  %s1 = inlined_call_operand.vmem [shape: f32[32,64], index: 1, kind: input, shape index: {}]
  %s2 = inlined_call_operand.vmem [shape: f32[1,64], index: 2, kind: input, shape index: {}]
  %s3 = inlined_call_operand.vmem [shape: f32[64,128], index: 3, kind: input, shape index: {}]
  %s4 = inlined_call_operand.vmem [shape: f32[1,128], index: 4, kind: input, shape index: {}]
  %s5 = inlined_call_operand.vmem [shape: f32[128,64], index: 5, kind: input, shape index: {}]
  %s6 = inlined_call_operand.vmem [shape: f32[1,64], index: 6, kind: input, shape index: {}]
  %s7 = inlined_call_operand.vmem [shape: f32[64,128], index: 7, kind: input, shape index: {}]
  %s8 = inlined_call_operand.vmem [shape: f32[1,128], index: 8, kind: input, shape index: {}]
  %s9 = inlined_call_operand.hbm [shape: f32[8,128], index: 9, kind: output, shape index: {0}]
  %s10 = inlined_call_operand.hbm [shape: f32[8,128], index: 10, kind: output, shape index: {1}]
  %11 = xla_tuple %s9, %s10
  %s12 = sld [smem:[#allocation0]]
  $region54: #{tpu_custom_call.1} parent=0
    _
  %s14 = ssub.s32 1, %s12
  %s15 = scalar_select 0, %s14, %s12
  $region1: #{tpu_custom_call.1} parent=0
    #allocation2 [shape = 'u8[4096]{0}', space=vmem, size = 0x1000, scoped, tag = 'output window, operand 0, single buffered']
    #allocation3 [shape = 's32[1]{0}', space=sflag, size = 0x4, scoped, tag = 'scoped memory for tpu_custom_call.1']
    #allocation4 [shape = 'u8[4096]{0}', space=vmem, size = 0x1000, scoped, tag = 'output window, operand 1, single buffered']
    #allocation5 [shape = 's32[1]{0}', space=sflag, size = 0x4, scoped, tag = 'scoped memory for tpu_custom_call.1']
    %16 = vsyncpa [#allocation3], 0
    %17 = vsyncpa [#allocation5], 0
    // Predicated region
    $region2: #{tpu_custom_call.1} parent=1 // pred_check
      _
    $region3: #{tpu_custom_call.1} parent=1 // pred_check_branch
      %19 = sbr.rel (0) target = $region5
    $region4: #{tpu_custom_call.1} parent=1 // pred_region
      _
    $region5: #{tpu_custom_call.1} parent=1 // pred_fallthru
      _
    // Predicated region
    $region6: #{tpu_custom_call.1} parent=1 // pred_check
      _
    $region7: #{tpu_custom_call.1} parent=1 // pred_check_branch
      %21 = sbr.rel (0) target = $region9
    $region8: #{tpu_custom_call.1} parent=1 // pred_region
      _
    $region9: #{tpu_custom_call.1} parent=1 // pred_fallthru
      _
    // Predicated region
    $region10: #{tpu_custom_call.1} parent=1 // pred_check
      _
    $region11: #{tpu_custom_call.1} parent=1 // pred_check_branch
      %23 = sbr.rel (0) target = $region13
    $region12: #{tpu_custom_call.1} parent=1 // pred_region
      _
    $region13: #{tpu_custom_call.1} parent=1 // pred_fallthru
      _
    // Predicated region
    $region14: #{tpu_custom_call.1} parent=1 // pred_check
      _
    $region15: #{tpu_custom_call.1} parent=1 // pred_check_branch
      %25 = sbr.rel (0) target = $region17
    $region16: #{tpu_custom_call.1} parent=1 // pred_region
      _
    $region17: #{tpu_custom_call.1} parent=1 // pred_fallthru
      _
    // Predicated region
    $region18: #{tpu_custom_call.1} parent=1 // pred_check
      _
    $region19: #{tpu_custom_call.1} parent=1 // pred_check_branch
      %27 = sbr.rel (0) target = $region21
    $region20: #{tpu_custom_call.1} parent=1 // pred_region
      _
    $region21: #{tpu_custom_call.1} parent=1 // pred_fallthru
      _
    // Predicated region
    $region22: #{tpu_custom_call.1} parent=1 // pred_check
      _
    $region23: #{tpu_custom_call.1} parent=1 // pred_check_branch
      %29 = sbr.rel (0) target = $region25
    $region24: #{tpu_custom_call.1} parent=1 // pred_region
      _
    $region25: #{tpu_custom_call.1} parent=1 // pred_fallthru
      _
    // Predicated region
    $region26: #{tpu_custom_call.1} parent=1 // pred_check
      _
    $region27: #{tpu_custom_call.1} parent=1 // pred_check_branch
      %31 = sbr.rel (0) target = $region29
    $region28: #{tpu_custom_call.1} parent=1 // pred_region
      _
    $region29: #{tpu_custom_call.1} parent=1 // pred_fallthru
      _
    // Predicated region
    $region30: #{tpu_custom_call.1} parent=1 // pred_check
      _
    $region31: #{tpu_custom_call.1} parent=1 // pred_check_branch
      %33 = sbr.rel (0) target = $region33
    $region32: #{tpu_custom_call.1} parent=1 // pred_region
      _
    $region33: #{tpu_custom_call.1} parent=1 // pred_fallthru
      _
    // Predicated region
    $region34: #{tpu_custom_call.1} parent=1 // pred_check
      _
    $region35: #{tpu_custom_call.1} parent=1 // pred_check_branch
      %35 = sbr.rel (0) target = $region37
    $region36: #{tpu_custom_call.1} parent=1 // pred_region
      _
    $region37: #{tpu_custom_call.1} parent=1 // pred_fallthru
      _
    %v36 = vld [vmem:[%s0] sm:$0xff]
    %v37 = vld [vmem:[%s1] sm:$0xff]
    %v38 = vld [vmem:[%s1 + $0x8] sm:$0xff]
    %v39 = vld [vmem:[%s1 + $0x10] sm:$0xff]
    %v40 = vld [vmem:[%s1 + $0x18] sm:$0xff]
    %v41 = vld [vmem:[%s2] sm:$0x1]
    %v43 = vlaneseq
    %v44 = vshrl.u32 %v43, 7
    %v45 = vsub.s32 0, %v44
    %v46 = vrot.slane %v41, %v45
    %vm48 = vcmask 261120
    %v50 = vsel %vm48, %v36, 0
    %52 = vmatprep.subr.mxu0 0.0
    %53 = vmatpush1.msra.mxu0 0.0
    %54 = vmatprep.subr.mxu0 0.0
    %55 = vmatpush1.msra.mxu0 0.0
    %56 = vmatprep.subr.mxu0 0.0
    %57 = vmatpush1.msra.mxu0 0.0
    %58 = vmatprep.subr.mxu0 0.0
    %59 = vmatpush1.msra.mxu0 0.0
    %60 = vmatprep.subr.mxu0 0.0
    %61 = vmatpush1.msra.mxu0 0.0
    %62 = vmatprep.subr.mxu0 0.0
    %63 = vmatpush1.msra.mxu0 0.0
    %64 = vmatprep.subr.mxu0 0.0
    %65 = vmatpush1.msra.mxu0 0.0
    %66 = vmatprep.subr.mxu0 0.0
    %67 = vmatpush1.msra.mxu0 0.0
    %68 = vmatprep.subr.mxu0 0.0
    %69 = vmatpush1.msra.mxu0 0.0
    %70 = vmatprep.subr.mxu0 0.0
    %71 = vmatpush1.msra.mxu0 0.0
    %72 = vmatprep.subr.mxu0 0.0
    %73 = vmatpush1.msra.mxu0 0.0
    %74 = vmatprep.subr.mxu0 0.0
    %75 = vmatpush1.msra.mxu0 0.0
    %76 = vmatprep.subr.mxu0 0.0
    %77 = vmatpush1.msra.mxu0 %v40
    %78 = vmatprep.subr.mxu0 0.0
    %79 = vmatpush1.msra.mxu0 %v39
    %80 = vmatprep.subr.mxu0 0.0
    %81 = vmatpush1.msra.mxu0 %v38
    %82 = vmatprep.subr.mxu0 0.0
    %83 = vmatpush1.msra.mxu0 %v37
    %84 = vmatprep.subr.mxu0 0.0
    %85 = vmatpush2.msra.mxu0 0.0
    %86 = vmatprep.subr.mxu0 0.0
    %87 = vmatpush2.msra.mxu0 0.0
    %88 = vmatprep.subr.mxu0 0.0
    %89 = vmatpush2.msra.mxu0 0.0
    %90 = vmatprep.subr.mxu0 0.0
    %91 = vmatpush2.msra.mxu0 0.0
    %92 = vmatprep.subr.mxu0 0.0
    %93 = vmatpush2.msra.mxu0 0.0
    %94 = vmatprep.subr.mxu0 0.0
    %95 = vmatpush2.msra.mxu0 0.0
    %96 = vmatprep.subr.mxu0 0.0
    %97 = vmatpush2.msra.mxu0 0.0
    %98 = vmatprep.subr.mxu0 0.0
    %99 = vmatpush2.msra.mxu0 0.0
    %100 = vmatprep.subr.mxu0 0.0
    %101 = vmatpush2.msra.mxu0 0.0
    %102 = vmatprep.subr.mxu0 0.0
    %103 = vmatpush2.msra.mxu0 0.0
    %104 = vmatprep.subr.mxu0 0.0
    %105 = vmatpush2.msra.mxu0 0.0
    %106 = vmatprep.subr.mxu0 0.0
    %107 = vmatpush2.msra.mxu0 0.0
    %108 = vmatprep.subr.mxu0 0.0
    %109 = vmatpush2.msra.mxu0 0.0
    %110 = vmatprep.subr.mxu0 0.0
    %111 = vmatpush2.msra.mxu0 0.0
    %112 = vmatprep.subr.mxu0 0.0
    %113 = vmatpush2.msra.mxu0 0.0
    %114 = vmatprep.subr.mxu0 0.0
    %115 = vmatpush2.msra.mxu0 0.0
    %116 = vmatprep.mubr.f32.mxu0 0.0
    %117 = vmatmul.mubr.f32.gmra.mxu0 %v50
    %v118 = vpop.f32.mrf.mxu0
    %v119 = vadd.f32 %v46, %v118
    %v120 = vpop.f32.mrf.mxu0
    %121 = vdwg.mxu0
    %v122 = vmax.f32 %v119, 0.0
    %v123 = vld [vmem:[%s3] sm:$0xff]
    %v124 = vld [vmem:[%s3 + $0x8] sm:$0xff]
    %v125 = vld [vmem:[%s3 + $0x10] sm:$0xff]
    %v126 = vld [vmem:[%s3 + $0x18] sm:$0xff]
    %v127 = vld [vmem:[%s3 + $0x20] sm:$0xff]
    %v128 = vld [vmem:[%s3 + $0x28] sm:$0xff]
    %v129 = vld [vmem:[%s3 + $0x30] sm:$0xff]
    %v130 = vld [vmem:[%s3 + $0x38] sm:$0xff]
    %v131 = vld [vmem:[%s4] sm:$0x1]
    %v133 = vlaneseq
    %v134 = vshrl.u32 %v133, 7
    %v135 = vsub.s32 0, %v134
    %v136 = vrot.slane %v131, %v135
    %vm138 = vcmask 523264
    %v140 = vsel %vm138, %v122, 0
    %142 = vmatprep.subr.mxu0 0.0
    %143 = vmatpush1.msra.mxu0 0.0
    %144 = vmatprep.subr.mxu0 0.0
    %145 = vmatpush1.msra.mxu0 0.0
    %146 = vmatprep.subr.mxu0 0.0
    %147 = vmatpush1.msra.mxu0 0.0
    %148 = vmatprep.subr.mxu0 0.0
    %149 = vmatpush1.msra.mxu0 0.0
    %150 = vmatprep.subr.mxu0 0.0
    %151 = vmatpush1.msra.mxu0 0.0
    %152 = vmatprep.subr.mxu0 0.0
    %153 = vmatpush1.msra.mxu0 0.0
    %154 = vmatprep.subr.mxu0 0.0
    %155 = vmatpush1.msra.mxu0 0.0
    %156 = vmatprep.subr.mxu0 0.0
    %157 = vmatpush1.msra.mxu0 0.0
    %158 = vmatprep.subr.mxu0 0.0
    %159 = vmatpush1.msra.mxu0 %v130
    %160 = vmatprep.subr.mxu0 0.0
    %161 = vmatpush1.msra.mxu0 %v129
    %162 = vmatprep.subr.mxu0 0.0
    %163 = vmatpush1.msra.mxu0 %v128
    %164 = vmatprep.subr.mxu0 0.0
    %165 = vmatpush1.msra.mxu0 %v127
    %166 = vmatprep.subr.mxu0 0.0
    %167 = vmatpush1.msra.mxu0 %v126
    %168 = vmatprep.subr.mxu0 0.0
    %169 = vmatpush1.msra.mxu0 %v125
    %170 = vmatprep.subr.mxu0 0.0
    %171 = vmatpush1.msra.mxu0 %v124
    %172 = vmatprep.subr.mxu0 0.0
    %173 = vmatpush1.msra.mxu0 %v123
    %174 = vmatprep.subr.mxu0 0.0
    %175 = vmatpush2.msra.mxu0 0.0
    %176 = vmatprep.subr.mxu0 0.0
    %177 = vmatpush2.msra.mxu0 0.0
    %178 = vmatprep.subr.mxu0 0.0
    %179 = vmatpush2.msra.mxu0 0.0
    %180 = vmatprep.subr.mxu0 0.0
    %181 = vmatpush2.msra.mxu0 0.0
    %182 = vmatprep.subr.mxu0 0.0
    %183 = vmatpush2.msra.mxu0 0.0
    %184 = vmatprep.subr.mxu0 0.0
    %185 = vmatpush2.msra.mxu0 0.0
    %186 = vmatprep.subr.mxu0 0.0
    %187 = vmatpush2.msra.mxu0 0.0
    %188 = vmatprep.subr.mxu0 0.0
    %189 = vmatpush2.msra.mxu0 0.0
    %190 = vmatprep.subr.mxu0 0.0
    %191 = vmatpush2.msra.mxu0 0.0
    %192 = vmatprep.subr.mxu0 0.0
    %193 = vmatpush2.msra.mxu0 0.0
    %194 = vmatprep.subr.mxu0 0.0
    %195 = vmatpush2.msra.mxu0 0.0
    %196 = vmatprep.subr.mxu0 0.0
    %197 = vmatpush2.msra.mxu0 0.0
    %198 = vmatprep.subr.mxu0 0.0
    %199 = vmatpush2.msra.mxu0 0.0
    %200 = vmatprep.subr.mxu0 0.0
    %201 = vmatpush2.msra.mxu0 0.0
    %202 = vmatprep.subr.mxu0 0.0
    %203 = vmatpush2.msra.mxu0 0.0
    %204 = vmatprep.subr.mxu0 0.0
    %205 = vmatpush2.msra.mxu0 0.0
    %206 = vmatprep.mubr.f32.mxu0 0.0
    %207 = vmatmul.mubr.f32.gmra.mxu0 %v140
    %v208 = vpop.f32.mrf.mxu0
    %v209 = vadd.f32 %v136, %v208
    %v210 = vpop.f32.mrf.mxu0
    %211 = vdwg.mxu0
    %v212 = vld [vmem:[%s5] sm:$0xff]
    %v213 = vld [vmem:[%s5 + $0x8] sm:$0xff]
    %v214 = vld [vmem:[%s5 + $0x10] sm:$0xff]
    %v215 = vld [vmem:[%s5 + $0x18] sm:$0xff]
    %v216 = vld [vmem:[%s5 + $0x20] sm:$0xff]
    %v217 = vld [vmem:[%s5 + $0x28] sm:$0xff]
    %v218 = vld [vmem:[%s5 + $0x30] sm:$0xff]
    %v219 = vld [vmem:[%s5 + $0x38] sm:$0xff]
    %v220 = vld [vmem:[%s5 + $0x40] sm:$0xff]
    %v221 = vld [vmem:[%s5 + $0x48] sm:$0xff]
    %v222 = vld [vmem:[%s5 + $0x50] sm:$0xff]
    %v223 = vld [vmem:[%s5 + $0x58] sm:$0xff]
    %v224 = vld [vmem:[%s5 + $0x60] sm:$0xff]
    %v225 = vld [vmem:[%s5 + $0x68] sm:$0xff]
    %v226 = vld [vmem:[%s5 + $0x70] sm:$0xff]
    %v227 = vld [vmem:[%s5 + $0x78] sm:$0xff]
    %v228 = vld [vmem:[%s6] sm:$0x1]
    %v230 = vlaneseq
    %v231 = vshrl.u32 %v230, 7
    %v232 = vsub.s32 0, %v231
    %v233 = vrot.slane %v228, %v232
    %235 = vmatprep.subr.mxu0 0.0
    %236 = vmatpush1.msra.mxu0 %v227
    %237 = vmatprep.subr.mxu0 0.0
    %238 = vmatpush1.msra.mxu0 %v226
    %239 = vmatprep.subr.mxu0 0.0
    %240 = vmatpush1.msra.mxu0 %v225
    %241 = vmatprep.subr.mxu0 0.0
    %242 = vmatpush1.msra.mxu0 %v224
    %243 = vmatprep.subr.mxu0 0.0
    %244 = vmatpush1.msra.mxu0 %v223
    %245 = vmatprep.subr.mxu0 0.0
    %246 = vmatpush1.msra.mxu0 %v222
    %247 = vmatprep.subr.mxu0 0.0
    %248 = vmatpush1.msra.mxu0 %v221
    %249 = vmatprep.subr.mxu0 0.0
    %250 = vmatpush1.msra.mxu0 %v220
    %251 = vmatprep.subr.mxu0 0.0
    %252 = vmatpush1.msra.mxu0 %v219
    %253 = vmatprep.subr.mxu0 0.0
    %254 = vmatpush1.msra.mxu0 %v218
    %255 = vmatprep.subr.mxu0 0.0
    %256 = vmatpush1.msra.mxu0 %v217
    %257 = vmatprep.subr.mxu0 0.0
    %258 = vmatpush1.msra.mxu0 %v216
    %259 = vmatprep.subr.mxu0 0.0
    %260 = vmatpush1.msra.mxu0 %v215
    %261 = vmatprep.subr.mxu0 0.0
    %262 = vmatpush1.msra.mxu0 %v214
    %263 = vmatprep.subr.mxu0 0.0
    %264 = vmatpush1.msra.mxu0 %v213
    %265 = vmatprep.subr.mxu0 0.0
    %266 = vmatpush1.msra.mxu0 %v212
    %267 = vmatprep.subr.mxu0 0.0
    %268 = vmatpush2.msra.mxu0 0.0
    %269 = vmatprep.subr.mxu0 0.0
    %270 = vmatpush2.msra.mxu0 0.0
    %271 = vmatprep.subr.mxu0 0.0
    %272 = vmatpush2.msra.mxu0 0.0
    %273 = vmatprep.subr.mxu0 0.0
    %274 = vmatpush2.msra.mxu0 0.0
    %275 = vmatprep.subr.mxu0 0.0
    %276 = vmatpush2.msra.mxu0 0.0
    %277 = vmatprep.subr.mxu0 0.0
    %278 = vmatpush2.msra.mxu0 0.0
    %279 = vmatprep.subr.mxu0 0.0
    %280 = vmatpush2.msra.mxu0 0.0
    %281 = vmatprep.subr.mxu0 0.0
    %282 = vmatpush2.msra.mxu0 0.0
    %283 = vmatprep.subr.mxu0 0.0
    %284 = vmatpush2.msra.mxu0 0.0
    %285 = vmatprep.subr.mxu0 0.0
    %286 = vmatpush2.msra.mxu0 0.0
    %287 = vmatprep.subr.mxu0 0.0
    %288 = vmatpush2.msra.mxu0 0.0
    %289 = vmatprep.subr.mxu0 0.0
    %290 = vmatpush2.msra.mxu0 0.0
    %291 = vmatprep.subr.mxu0 0.0
    %292 = vmatpush2.msra.mxu0 0.0
    %293 = vmatprep.subr.mxu0 0.0
    %294 = vmatpush2.msra.mxu0 0.0
    %295 = vmatprep.subr.mxu0 0.0
    %296 = vmatpush2.msra.mxu0 0.0
    %297 = vmatprep.subr.mxu0 0.0
    %298 = vmatpush2.msra.mxu0 0.0
    %299 = vmatprep.mubr.f32.mxu0 0.0
    %300 = vmatmul.mubr.f32.gmra.mxu0 %v209
    %v301 = vpop.f32.mrf.mxu0
    %v302 = vadd.f32 %v233, %v301
    %v303 = vpop.f32.mrf.mxu0
    %304 = vdwg.mxu0
    %v305 = vmax.f32 %v302, 0.0
    %v306 = vld [vmem:[%s7] sm:$0xff]
    %v307 = vld [vmem:[%s7 + $0x8] sm:$0xff]
    %v308 = vld [vmem:[%s7 + $0x10] sm:$0xff]
    %v309 = vld [vmem:[%s7 + $0x18] sm:$0xff]
    %v310 = vld [vmem:[%s7 + $0x20] sm:$0xff]
    %v311 = vld [vmem:[%s7 + $0x28] sm:$0xff]
    %v312 = vld [vmem:[%s7 + $0x30] sm:$0xff]
    %v313 = vld [vmem:[%s7 + $0x38] sm:$0xff]
    %v314 = vld [vmem:[%s8] sm:$0x1]
    %v316 = vlaneseq
    %v317 = vshrl.u32 %v316, 7
    %v318 = vsub.s32 0, %v317
    %v319 = vrot.slane %v314, %v318
    %v322 = vsel %vm138, %v305, 0
    %324 = vmatprep.subr.mxu0 0.0
    %325 = vmatpush1.msra.mxu0 0.0
    %326 = vmatprep.subr.mxu0 0.0
    %327 = vmatpush1.msra.mxu0 0.0
    %328 = vmatprep.subr.mxu0 0.0
    %329 = vmatpush1.msra.mxu0 0.0
    %330 = vmatprep.subr.mxu0 0.0
    %331 = vmatpush1.msra.mxu0 0.0
    %332 = vmatprep.subr.mxu0 0.0
    %333 = vmatpush1.msra.mxu0 0.0
    %334 = vmatprep.subr.mxu0 0.0
    %335 = vmatpush1.msra.mxu0 0.0
    %336 = vmatprep.subr.mxu0 0.0
    %337 = vmatpush1.msra.mxu0 0.0
    %338 = vmatprep.subr.mxu0 0.0
    %339 = vmatpush1.msra.mxu0 0.0
    %340 = vmatprep.subr.mxu0 0.0
    %341 = vmatpush1.msra.mxu0 %v313
    %342 = vmatprep.subr.mxu0 0.0
    %343 = vmatpush1.msra.mxu0 %v312
    %344 = vmatprep.subr.mxu0 0.0
    %345 = vmatpush1.msra.mxu0 %v311
    %346 = vmatprep.subr.mxu0 0.0
    %347 = vmatpush1.msra.mxu0 %v310
    %348 = vmatprep.subr.mxu0 0.0
    %349 = vmatpush1.msra.mxu0 %v309
    %350 = vmatprep.subr.mxu0 0.0
    %351 = vmatpush1.msra.mxu0 %v308
    %352 = vmatprep.subr.mxu0 0.0
    %353 = vmatpush1.msra.mxu0 %v307
    %354 = vmatprep.subr.mxu0 0.0
    %355 = vmatpush1.msra.mxu0 %v306
    %356 = vmatprep.subr.mxu0 0.0
    %357 = vmatpush2.msra.mxu0 0.0
    %358 = vmatprep.subr.mxu0 0.0
    %359 = vmatpush2.msra.mxu0 0.0
    %360 = vmatprep.subr.mxu0 0.0
    %361 = vmatpush2.msra.mxu0 0.0
    %362 = vmatprep.subr.mxu0 0.0
    %363 = vmatpush2.msra.mxu0 0.0
    %364 = vmatprep.subr.mxu0 0.0
    %365 = vmatpush2.msra.mxu0 0.0
    %366 = vmatprep.subr.mxu0 0.0
    %367 = vmatpush2.msra.mxu0 0.0
    %368 = vmatprep.subr.mxu0 0.0
    %369 = vmatpush2.msra.mxu0 0.0
    %370 = vmatprep.subr.mxu0 0.0
    %371 = vmatpush2.msra.mxu0 0.0
    %372 = vmatprep.subr.mxu0 0.0
    %373 = vmatpush2.msra.mxu0 0.0
    %374 = vmatprep.subr.mxu0 0.0
    %375 = vmatpush2.msra.mxu0 0.0
    %376 = vmatprep.subr.mxu0 0.0
    %377 = vmatpush2.msra.mxu0 0.0
    %378 = vmatprep.subr.mxu0 0.0
    %379 = vmatpush2.msra.mxu0 0.0
    %380 = vmatprep.subr.mxu0 0.0
    %381 = vmatpush2.msra.mxu0 0.0
    %382 = vmatprep.subr.mxu0 0.0
    %383 = vmatpush2.msra.mxu0 0.0
    %384 = vmatprep.subr.mxu0 0.0
    %385 = vmatpush2.msra.mxu0 0.0
    %386 = vmatprep.subr.mxu0 0.0
    %387 = vmatpush2.msra.mxu0 0.0
    %388 = vmatprep.mubr.f32.mxu0 0.0
    %389 = vmatmul.mubr.f32.gmra.mxu0 %v322
    %v390 = vpop.f32.mrf.mxu0
    %v391 = vadd.f32 %v319, %v390
    %v392 = vpop.f32.mrf.mxu0
    %393 = vdwg.mxu0
    %394 = vst [vmem:[#allocation2] sm:$0xff] %v209
    %395 = vst [vmem:[#allocation4] sm:$0xff] %v391
    // Predicated region
    $region38: #{tpu_custom_call.1} parent=1 // pred_check
      _
    $region39: #{tpu_custom_call.1} parent=1 // pred_check_branch
      %397 = sbr.rel (0) target = $region41
    $region40: #{tpu_custom_call.1} parent=1 // pred_region
      %s399 = ssub.s32 128, 128
      %400 = vsyncadd [#allocation3], %s399
      %s402 = sshll.u32 [#allocation2], 4
      %s403 = int_to_ptr.vmem [resolvable:$true] %s402
      %405 = dma.vmem_to_hbm [thread:$0]  %s403, 128, %s9, [#allocation3]
    $region41: #{tpu_custom_call.1} parent=1 // pred_fallthru
      _
    // Predicated region
    $region42: #{tpu_custom_call.1} parent=1 // pred_check
      _
    $region43: #{tpu_custom_call.1} parent=1 // pred_check_branch
      %407 = sbr.rel (0) target = $region45
    $region44: #{tpu_custom_call.1} parent=1 // pred_region
      %s409 = ssub.s32 128, 128
      %410 = vsyncadd [#allocation5], %s409
      %s412 = sshll.u32 [#allocation4], 4
      %s413 = int_to_ptr.vmem [resolvable:$true] %s412
      %415 = dma.vmem_to_hbm [thread:$0]  %s413, 128, %s10, [#allocation5]
    $region45: #{tpu_custom_call.1} parent=1 // pred_fallthru
      _
    // Predicated region
    $region46: #{tpu_custom_call.1} parent=1 // pred_check
      _
    $region47: #{tpu_custom_call.1} parent=1 // pred_check_branch
      %417 = sbr.rel (0) target = $region49
    $region48: #{tpu_custom_call.1} parent=1 // pred_region
      %418 = dma.done [#allocation3], 128
    $region49: #{tpu_custom_call.1} parent=1 // pred_fallthru
      _
    // Predicated region
    $region50: #{tpu_custom_call.1} parent=1 // pred_check
      _
    $region51: #{tpu_custom_call.1} parent=1 // pred_check_branch
      %420 = sbr.rel (0) target = $region53
    $region52: #{tpu_custom_call.1} parent=1 // pred_region
      %421 = dma.done [#allocation5], 128
    $region53: #{tpu_custom_call.1} parent=1 // pred_fallthru
      _
    %422 = vsyncpa [#allocation3], 1
    %423 = vsyncpa [#allocation5], 1

</llo_original>
